<compile_context>
chip_gen: v6e
topology: v6e:2x2x1
jax: 0.10.0
libtpu: 0.0.40
codegen_flags: <defaults>
</compile_context>

<pallas_src>
import functools

import jax
import jax.numpy as jnp
import numpy as np
from jax.experimental import pallas as pl
from jax.experimental.pallas import tpu as pltpu


def _p4d_kernel(xyz_c_ref, xyz_o_ref, feat_ref, ofeat_ref,
                w1_ref, b1_ref, w2_ref, b2_ref,
                out_ref, x_ref, *, chunk):
    tb, n_np, _ = xyz_c_ref.shape          # (tb, Np, 3)
    n = xyz_o_ref.shape[2]                 # N
    cp = feat_ref.shape[1]                 # Cp
    c = ofeat_ref.shape[1]                 # C
    mxu_dtype = w1_ref.dtype
    num_chunks = n // chunk                # static
    big = jnp.float32(1e30)

    def timestep(t, carry):
        # dynamic indexing only on the untiled leading dim -> cheap address math
        xc = xyz_c_ref[t]                                      # (Np, 3) f32
        xc0, xc1, xc2 = xc[:, 0:1], xc[:, 1:2], xc[:, 2:3]     # (Np, 1) columns
        feat_t = feat_ref[t].astype(jnp.float32)               # (Cp, Np) f32 for interp

        def do_chunk(col0):
            xo = xyz_o_ref[t, :, pl.ds(col0, chunk)]           # (3, CH) f32

            # pairwise squared distances: 3 broadcasted VPU FMAs (diff-then-square)
            diff = xc0 - xo[0:1, :]
            d2 = diff * diff
            diff = xc1 - xo[1:2, :]
            d2 = d2 + diff * diff
            diff = xc2 - xo[2:3, :]
            d2 = d2 + diff * diff                              # (Np, CH)

            # three_nn: 3 rounds of sublane min/argmin building an
            # *unnormalized* dense (Np, CH) interpolation-weight matrix.
            sub_idx = jax.lax.broadcasted_iota(jnp.int32, (n_np, chunk), 0)
            work = d2
            wmat = jnp.zeros((n_np, chunk), jnp.float32)
            norm = jnp.zeros((1, chunk), jnp.float32)
            for _ in range(3):
                cur = jnp.min(work, axis=0, keepdims=True)                 # (1, CH)
                sel = jnp.min(jnp.where(work == cur, sub_idx, n_np),
                              axis=0, keepdims=True)                       # argmin
                onehot = sub_idx == sel
                wk = pl.reciprocal(jnp.sqrt(cur) + 1e-8, approx=True)      # (1, CH)
                wmat = jnp.where(onehot, wk, wmat)
                norm = norm + wk
                work = jnp.where(onehot, big, work)

            # three_interpolate fused into the chunk: (Cp, Np) @ (Np, CH), f32
            interp = jnp.dot(feat_t, wmat, preferred_element_type=jnp.float32)
            interp = interp * pl.reciprocal(norm, approx=True)

            # merged layer-1 input: [interpolated ; skip] -> (Cp+C, CH)
            x_ref[0:cp, :] = interp.astype(mxu_dtype)
            x_ref[cp:cp + c, :] = ofeat_ref[t, :, pl.ds(col0, chunk)]

            # 1x1-conv MLP (eval-mode BN folded into the weights), fused per chunk
            h = jnp.dot(w1_ref[...], x_ref[...],
                        preferred_element_type=jnp.float32)                # (M0, CH)
            h = jnp.maximum(h + b1_ref[...], 0.0)
            h = jnp.dot(w2_ref[...], h.astype(mxu_dtype),
                        preferred_element_type=jnp.float32)                # (M1, CH)
            h = jnp.maximum(h + b2_ref[...], 0.0)
            out_ref[t, :, pl.ds(col0, chunk)] = h.astype(out_ref.dtype)

        if num_chunks == 1:
            do_chunk(0)                                        # static slice path
        else:
            # chunk size is a multiple of 128 here -> lane-aligned dynamic slices
            def chunk_body(j, carry2):
                do_chunk(pl.multiple_of(j * chunk, chunk))
                return carry2
            jax.lax.fori_loop(0, num_chunks, chunk_body, 0)
        return carry

    jax.lax.fori_loop(0, tb, timestep, 0)


def p4d_trans_conv(xyzs, original_xyzs, features, original_features, params,
                   *, mxu_dtype=jnp.bfloat16, tb=None, n_chunk=None):
    """Returns (new_xyzs, new_features) just like the PyTorch module."""
    B, T, Np, _ = xyzs.shape
    N = original_xyzs.shape[2]
    Cp = features.shape[2]
    C = original_features.shape[2]
    w1, w2 = params["w1"], params["w2"]
    M0, M1 = w1.shape[0], w2.shape[0]
    BT = B * T

    def cdiv(a, b):
        return -(-a // b)

    # ---- eval-mode BatchNorm folded into the 1x1-conv weights ----------------
    eps = 1e-5
    s1 = params["bn1_gamma"] / jnp.sqrt(params["bn1_var"] + eps)
    b1 = params["bn1_beta"] - params["bn1_mean"] * s1
    s2 = params["bn2_gamma"] / jnp.sqrt(params["bn2_var"] + eps)
    b2 = params["bn2_beta"] - params["bn2_mean"] * s2

    w1c = (w1 * s1[:, None]).astype(mxu_dtype)        # merged (M0, Cp+C)
    w2c = (w2 * s2[:, None]).astype(mxu_dtype)        # (M1, M0)
    b1c = b1[:, None].astype(jnp.float32)             # (M0, 1)
    b2c = b2[:, None].astype(jnp.float32)             # (M1, 1)

    # ---- grid sizing: >= 2 "parallel" steps (v7x has 2 TensorCores), larger
    # tb only when per-timestep selection work is tiny (amortize ~0.35us/step).
    if tb is None:
        tb_cap = max(1, cdiv(BT, 2))
        work = Np * N
        tb = 1 if work >= (1 << 16) else min(tb_cap, max(1, (1 << 16) // work))
    tb = max(1, min(tb, BT))
    bt_pad = cdiv(BT, tb) * tb
    grid = bt_pad // tb

    # ---- N-chunk for the fused selection/interp/MLP loop ---------------------
    if n_chunk is None:
        n_chunk = N
        for ch in (256, 512, 128):
            if N % ch == 0:
                n_chunk = ch
                break
    n_chunk = min(n_chunk, N)
    assert N % n_chunk == 0

    # ---- glue reshapes (coords stay f32; features/weights may be bf16) -------
    xyz_c = xyzs.reshape(BT, Np, 3)
    xyz_o = jnp.transpose(original_xyzs, (0, 1, 3, 2)).reshape(BT, 3, N)
    feat = features.reshape(BT, Cp, Np).astype(mxu_dtype)
    ofeat = original_features.reshape(BT, C, N).astype(mxu_dtype)
    if bt_pad != BT:                                   # padded steps compute
        pad = bt_pad - BT                              # finite garbage, sliced off
        xyz_c = jnp.pad(xyz_c, ((0, pad), (0, 0), (0, 0)))
        xyz_o = jnp.pad(xyz_o, ((0, pad), (0, 0), (0, 0)))
        feat = jnp.pad(feat, ((0, pad), (0, 0), (0, 0)))
        ofeat = jnp.pad(ofeat, ((0, pad), (0, 0), (0, 0)))

    # ---- explicit VMEM budget (v5e default scoped limit is only 16 MiB) ------
    def _rup(x, m):
        return cdiv(x, m) * m

    def _blk(shape, itemsize):
        lead = 1
        for d in shape[:-2]:
            lead *= int(d)
        return lead * _rup(int(shape[-2]), 8) * _rup(int(shape[-1]), 128) * itemsize

    mxu_b = jnp.dtype(mxu_dtype).itemsize
    est = 2 * (_blk((tb, Np, 3), 4) + _blk((tb, 3, N), 4)
               + _blk((tb, Cp, Np), mxu_b) + _blk((tb, C, N), mxu_b)
               + _blk((tb, M1, N), 4))                          # double-buffered blocks
    est += 2 * (_blk((M0, Cp + C), mxu_b) + _blk((M0, 1), 4)
                + _blk((M1, M0), mxu_b) + _blk((M1, 1), 4))     # weights (see TODO)
    est += _blk((Cp + C, n_chunk), mxu_b)                       # scratch
    est += 8 * _blk((Np, n_chunk), 4)                           # selection working set
    vmem_limit = int(min(max(est * 3 // 2 + (4 << 20), 32 << 20), 64 << 20))

    kernel = functools.partial(_p4d_kernel, chunk=n_chunk)
    out = pl.pallas_call(
        kernel,
        out_shape=jax.ShapeDtypeStruct((bt_pad, M1, N), jnp.float32),
        grid_spec=pltpu.PrefetchScalarGridSpec(
            num_scalar_prefetch=0,
            grid=(grid,),
            in_specs=[
                pl.BlockSpec((tb, Np, 3), lambda i: (i, 0, 0)),   # convolved xyz
                pl.BlockSpec((tb, 3, N), lambda i: (i, 0, 0)),    # original xyz (3, N)
                pl.BlockSpec((tb, Cp, Np), lambda i: (i, 0, 0)),  # features
                pl.BlockSpec((tb, C, N), lambda i: (i, 0, 0)),    # skip features
                pl.BlockSpec((M0, Cp + C), lambda i: (0, 0)),     # merged conv1 weight
                pl.BlockSpec((M0, 1), lambda i: (0, 0)),          # bn1 shift
                pl.BlockSpec((M1, M0), lambda i: (0, 0)),         # conv2 weight
                pl.BlockSpec((M1, 1), lambda i: (0, 0)),          # bn2 shift
            ],
            out_specs=pl.BlockSpec((tb, M1, N), lambda i: (i, 0, 0)),
            scratch_shapes=[pltpu.VMEM((Cp + C, n_chunk), mxu_dtype)],
        ),
        compiler_params=pltpu.CompilerParams(
            dimension_semantics=("parallel",),
            vmem_limit_bytes=vmem_limit),
    )(xyz_c, xyz_o, feat, ofeat, w1c, b1c, w2c, b2c)

    new_features = out[:BT].reshape(B, T, M1, N)       # no post-kernel transpose
    new_xyzs = original_xyzs
    return new_xyzs, new_features


def reference(xyzs, original_xyzs, features, original_features, params):
    """Pure-JAX reference of the PyTorch forward (eval-mode BN)."""
    eps = 1e-5
    w1, w2 = params["w1"], params["w2"]
    s1 = params["bn1_gamma"] / jnp.sqrt(params["bn1_var"] + eps)
    b1 = params["bn1_beta"] - params["bn1_mean"] * s1
    s2 = params["bn2_gamma"] / jnp.sqrt(params["bn2_var"] + eps)
    b2 = params["bn2_beta"] - params["bn2_mean"] * s2

    diff = original_xyzs[:, :, :, None, :] - xyzs[:, :, None, :, :]     # (B,T,N,Np,3)
    dist = jnp.sqrt(jnp.maximum(jnp.sum(diff * diff, axis=-1), 0.0))    # (B,T,N,Np)
    neg3, idx = jax.lax.top_k(-dist, 3)
    d3 = -neg3
    w = 1.0 / (d3 + 1e-8)
    w = w / jnp.sum(w, axis=-1, keepdims=True)
    onehot = jax.nn.one_hot(idx, xyzs.shape[2], dtype=jnp.float32)      # (B,T,N,3,Np)
    Wd = jnp.sum(onehot * w[..., None], axis=3)                         # (B,T,N,Np)
    interp = jnp.einsum('btcm,btnm->btcn', features, Wd)                # (B,T,Cp,N)
    x = jnp.concatenate([interp, original_features], axis=2)            # (B,T,Cin,N)
    h = jnp.einsum('oc,btcn->bton', w1, x)
    h = jnp.maximum(h * s1[None, None, :, None] + b1[None, None, :, None], 0.0)
    h = jnp.einsum('oc,btcn->bton', w2, h)
    h = jnp.maximum(h * s2[None, None, :, None] + b2[None, None, :, None], 0.0)
    return original_xyzs, h


if __name__ == "__main__":
    # module config: in_planes=8, mlp_planes=[32, 16], mlp_batch_norm=[True, True],
    #                mlp_activation=[True, True], original_planes=4, bias=False
    B, T, Np, N = 2, 3, 8, 16
    Cp, C = 8, 4
    M0, M1 = 32, 16

    key = jax.random.PRNGKey(0)
    ks = jax.random.split(key, 12)

    xyzs = jax.random.uniform(ks[0], (B, T, Np, 3), jnp.float32)
    original_xyzs = jax.random.uniform(ks[1], (B, T, N, 3), jnp.float32)
    features = jax.random.normal(ks[2], (B, T, Cp, Np), jnp.float32)
    original_features = jax.random.normal(ks[3], (B, T, C, N), jnp.float32)

    params = {
        # Conv1d weights (kernel_size=1, bias=False): (out, in, 1) -> stored (out, in)
        "w1": jax.random.normal(ks[4], (M0, Cp + C), jnp.float32) * 0.2,
        "w2": jax.random.normal(ks[5], (M1, M0), jnp.float32) * 0.2,
        # BatchNorm1d params / running stats (eval-mode)
        "bn1_gamma": 1.0 + 0.1 * jax.random.normal(ks[6], (M0,), jnp.float32),
        "bn1_beta": 0.1 * jax.random.normal(ks[7], (M0,), jnp.float32),
        "bn1_mean": 0.1 * jax.random.normal(ks[8], (M0,), jnp.float32),
        "bn1_var": 1.0 + 0.1 * jax.random.uniform(ks[9], (M0,), jnp.float32),
        "bn2_gamma": 1.0 + 0.1 * jax.random.normal(ks[10], (M1,), jnp.float32),
        "bn2_beta": 0.1 * jax.random.normal(ks[11], (M1,), jnp.float32),
        "bn2_mean": jnp.zeros((M1,), jnp.float32),
        "bn2_var": jnp.ones((M1,), jnp.float32),
    }

    # exact-ish f32 MXU path
    fwd_f32 = jax.jit(functools.partial(p4d_trans_conv, mxu_dtype=jnp.float32))
    new_xyzs, feats_f32 = fwd_f32(xyzs, original_xyzs, features, original_features, params)
    jax.block_until_ready(feats_f32)

    # default bf16 MXU path (mem-bound win on v5e/v6e); coords / three_nn stay f32
    fwd_bf16 = jax.jit(p4d_trans_conv)
    _, feats_bf16 = fwd_bf16(xyzs, original_xyzs, features, original_features, params)
    jax.block_until_ready(feats_bf16)

    ref_xyzs, ref_features = reference(
        xyzs, original_xyzs, features, original_features, params)

    assert new_xyzs.shape == (B, T, N, 3)
    assert feats_f32.shape == (B, T, M1, N)
    np.testing.assert_allclose(np.asarray(feats_f32), np.asarray(ref_features),
                               rtol=2e-2, atol=2e-2)
    np.testing.assert_allclose(np.asarray(feats_bf16), np.asarray(ref_features),
                               rtol=6e-2, atol=6e-2)
    print("KERNEL_OK")
</pallas_src>

<mosaic_0001>
module attributes {stable_mosaic.version = 11 : i64} {
  func.func @_p4d_kernel(%arg0: i32, %arg1: memref<3x8x3xf32, #tpu.memory_space<vmem>>, %arg2: memref<3x3x16xf32, #tpu.memory_space<vmem>>, %arg3: memref<3x8x8xf32, #tpu.memory_space<vmem>>, %arg4: memref<3x4x16xf32, #tpu.memory_space<vmem>>, %arg5: memref<32x12xf32, #tpu.memory_space<vmem>>, %arg6: memref<32x1xf32, #tpu.memory_space<vmem>>, %arg7: memref<16x32xf32, #tpu.memory_space<vmem>>, %arg8: memref<16x1xf32, #tpu.memory_space<vmem>>, %arg9: memref<3x16x16xf32, #tpu.memory_space<vmem>>, %arg10: memref<12x16xf32, #tpu.memory_space<vmem>>) attributes {dimension_semantics = [#tpu.dimension_semantics<parallel>], iteration_bounds = array<i64: 2>, scalar_prefetch = 0 : i64, scratch_operands = 1 : i64, tpu.core_type = #tpu.core_type<tc>, window_params = [{transform_indices = @transform_0, window_bounds = array<i64: 3, 8, 3>}, {transform_indices = @transform_1, window_bounds = array<i64: 3, 3, 16>}, {transform_indices = @transform_2, window_bounds = array<i64: 3, 8, 8>}, {transform_indices = @transform_3, window_bounds = array<i64: 3, 4, 16>}, {pipeline_mode = #tpu.pipeline_mode<synchronous>, transform_indices = @transform_4, window_bounds = array<i64: 32, 12>}, {pipeline_mode = #tpu.pipeline_mode<synchronous>, transform_indices = @transform_5, window_bounds = array<i64: 32, 1>}, {pipeline_mode = #tpu.pipeline_mode<synchronous>, transform_indices = @transform_6, window_bounds = array<i64: 16, 32>}, {pipeline_mode = #tpu.pipeline_mode<synchronous>, transform_indices = @transform_7, window_bounds = array<i64: 16, 1>}, {transform_indices = @transform_8, window_bounds = array<i64: 3, 16, 16>}]} {
    %cst = arith.constant 1.000000e+30 : f32
    %c0_i32 = arith.constant 0 : i32
    %c3_i32 = arith.constant 3 : i32
    %0 = arith.addi %c0_i32, %c3_i32 : i32
    %c1_i32 = arith.constant 1 : i32
    scf.for %arg11 = %c0_i32 to %0 step %c1_i32  : i32 {
      %1 = arith.index_cast %arg11 : i32 to index
      %c0 = arith.constant 0 : index
      %c0_1 = arith.constant 0 : index
      %2 = vector.load %arg1[%1, %c0, %c0_1] : memref<3x8x3xf32, #tpu.memory_space<vmem>>, vector<1x8x3xf32>
      %3 = vector.shape_cast %2 : vector<1x8x3xf32> to vector<8x3xf32>
      %4 = vector.extract_strided_slice %3 {offsets = [0, 0], sizes = [8, 1], strides = [1, 1]} : vector<8x3xf32> to vector<8x1xf32>
      %5 = vector.extract_strided_slice %3 {offsets = [0, 1], sizes = [8, 1], strides = [1, 1]} : vector<8x3xf32> to vector<8x1xf32>
      %6 = vector.extract_strided_slice %3 {offsets = [0, 2], sizes = [8, 1], strides = [1, 1]} : vector<8x3xf32> to vector<8x1xf32>
      %7 = arith.index_cast %arg11 : i32 to index
      %c0_2 = arith.constant 0 : index
      %c0_3 = arith.constant 0 : index
      %8 = vector.load %arg3[%7, %c0_2, %c0_3] : memref<3x8x8xf32, #tpu.memory_space<vmem>>, vector<1x8x8xf32>
      %9 = vector.shape_cast %8 : vector<1x8x8xf32> to vector<8x8xf32>
      %10 = arith.index_cast %arg11 : i32 to index
      %c0_4 = arith.constant 0 : index
      %c0_5 = arith.constant 0 : index
      %11 = vector.load %arg2[%10, %c0_4, %c0_5] : memref<3x3x16xf32, #tpu.memory_space<vmem>>, vector<1x3x16xf32>
      %12 = vector.shape_cast %11 : vector<1x3x16xf32> to vector<3x16xf32>
      %13 = vector.extract_strided_slice %12 {offsets = [0, 0], sizes = [1, 16], strides = [1, 1]} : vector<3x16xf32> to vector<1x16xf32>
      %14 = vector.broadcast %4 : vector<8x1xf32> to vector<8x16xf32>
      %15 = vector.broadcast %13 : vector<1x16xf32> to vector<8x16xf32>
      %16 = arith.subf %14, %15 : vector<8x16xf32>
      %17 = arith.mulf %16, %16 : vector<8x16xf32>
      %18 = vector.extract_strided_slice %12 {offsets = [1, 0], sizes = [1, 16], strides = [1, 1]} : vector<3x16xf32> to vector<1x16xf32>
      %19 = vector.broadcast %5 : vector<8x1xf32> to vector<8x16xf32>
      %20 = vector.broadcast %18 : vector<1x16xf32> to vector<8x16xf32>
      %21 = arith.subf %19, %20 : vector<8x16xf32>
      %22 = arith.mulf %21, %21 : vector<8x16xf32>
      %23 = arith.addf %17, %22 : vector<8x16xf32>
      %24 = vector.extract_strided_slice %12 {offsets = [2, 0], sizes = [1, 16], strides = [1, 1]} : vector<3x16xf32> to vector<1x16xf32>
      %25 = vector.broadcast %6 : vector<8x1xf32> to vector<8x16xf32>
      %26 = vector.broadcast %24 : vector<1x16xf32> to vector<8x16xf32>
      %27 = arith.subf %25, %26 : vector<8x16xf32>
      %28 = arith.mulf %27, %27 : vector<8x16xf32>
      %29 = arith.addf %23, %28 : vector<8x16xf32>
      %30 = tpu.iota {dimensions = array<i32: 0>} : vector<8x16xi32>
      %cst_6 = arith.constant 0.000000e+00 : f32
      %31 = vector.broadcast %cst_6 : f32 to vector<8x16xf32>
      %cst_7 = arith.constant 0.000000e+00 : f32
      %32 = vector.broadcast %cst_7 : f32 to vector<1x16xf32>
      %cst_8 = arith.constant dense<0x7F800000> : vector<16xf32>
      %33 = vector.multi_reduction <minimumf>, %29, %cst_8 [0] : vector<8x16xf32> to vector<16xf32>
      %34 = vector.shape_cast %33 : vector<16xf32> to vector<1x16xf32>
      %35 = vector.broadcast %34 : vector<1x16xf32> to vector<8x16xf32>
      %36 = arith.cmpf oeq, %29, %35 : vector<8x16xf32>
      %c8_i32 = arith.constant 8 : i32
      %37 = vector.broadcast %c8_i32 : i32 to vector<8x16xi32>
      %38 = arith.select %36, %30, %37 : vector<8x16xi1>, vector<8x16xi32>
      %cst_9 = arith.constant dense<2147483647> : vector<16xi32>
      %39 = vector.multi_reduction <minsi>, %38, %cst_9 [0] : vector<8x16xi32> to vector<16xi32>
      %40 = vector.shape_cast %39 : vector<16xi32> to vector<1x16xi32>
      %41 = vector.broadcast %40 : vector<1x16xi32> to vector<8x16xi32>
      %42 = arith.cmpi eq, %30, %41 : vector<8x16xi32>
      %43 = math.sqrt %34 : vector<1x16xf32>
      %cst_10 = arith.constant 9.99999993E-9 : f32
      %44 = vector.broadcast %cst_10 : f32 to vector<1x16xf32>
      %45 = arith.addf %43, %44 : vector<1x16xf32>
      %46 = tpu.reciprocal %45 {approx = true} : vector<1x16xf32> -> vector<1x16xf32>
      %47 = vector.shape_cast %46 : vector<1x16xf32> to vector<1x16xf32>
      %48 = vector.broadcast %47 : vector<1x16xf32> to vector<8x16xf32>
      %49 = arith.select %42, %48, %31 : vector<8x16xi1>, vector<8x16xf32>
      %50 = arith.addf %32, %46 : vector<1x16xf32>
      %51 = vector.broadcast %cst : f32 to vector<8x16xf32>
      %52 = arith.select %42, %51, %29 : vector<8x16xi1>, vector<8x16xf32>
      %cst_11 = arith.constant dense<0x7F800000> : vector<16xf32>
      %53 = vector.multi_reduction <minimumf>, %52, %cst_11 [0] : vector<8x16xf32> to vector<16xf32>
      %54 = vector.shape_cast %53 : vector<16xf32> to vector<1x16xf32>
      %55 = vector.broadcast %54 : vector<1x16xf32> to vector<8x16xf32>
      %56 = arith.cmpf oeq, %52, %55 : vector<8x16xf32>
      %c8_i32_12 = arith.constant 8 : i32
      %57 = vector.broadcast %c8_i32_12 : i32 to vector<8x16xi32>
      %58 = arith.select %56, %30, %57 : vector<8x16xi1>, vector<8x16xi32>
      %cst_13 = arith.constant dense<2147483647> : vector<16xi32>
      %59 = vector.multi_reduction <minsi>, %58, %cst_13 [0] : vector<8x16xi32> to vector<16xi32>
      %60 = vector.shape_cast %59 : vector<16xi32> to vector<1x16xi32>
      %61 = vector.broadcast %60 : vector<1x16xi32> to vector<8x16xi32>
      %62 = arith.cmpi eq, %30, %61 : vector<8x16xi32>
      %63 = math.sqrt %54 : vector<1x16xf32>
      %cst_14 = arith.constant 9.99999993E-9 : f32
      %64 = vector.broadcast %cst_14 : f32 to vector<1x16xf32>
      %65 = arith.addf %63, %64 : vector<1x16xf32>
      %66 = tpu.reciprocal %65 {approx = true} : vector<1x16xf32> -> vector<1x16xf32>
      %67 = vector.shape_cast %66 : vector<1x16xf32> to vector<1x16xf32>
      %68 = vector.broadcast %67 : vector<1x16xf32> to vector<8x16xf32>
      %69 = arith.select %62, %68, %49 : vector<8x16xi1>, vector<8x16xf32>
      %70 = arith.addf %50, %66 : vector<1x16xf32>
      %71 = vector.broadcast %cst : f32 to vector<8x16xf32>
      %72 = arith.select %62, %71, %52 : vector<8x16xi1>, vector<8x16xf32>
      %cst_15 = arith.constant dense<0x7F800000> : vector<16xf32>
      %73 = vector.multi_reduction <minimumf>, %72, %cst_15 [0] : vector<8x16xf32> to vector<16xf32>
      %74 = vector.shape_cast %73 : vector<16xf32> to vector<1x16xf32>
      %75 = vector.broadcast %74 : vector<1x16xf32> to vector<8x16xf32>
      %76 = arith.cmpf oeq, %72, %75 : vector<8x16xf32>
      %c8_i32_16 = arith.constant 8 : i32
      %77 = vector.broadcast %c8_i32_16 : i32 to vector<8x16xi32>
      %78 = arith.select %76, %30, %77 : vector<8x16xi1>, vector<8x16xi32>
      %cst_17 = arith.constant dense<2147483647> : vector<16xi32>
      %79 = vector.multi_reduction <minsi>, %78, %cst_17 [0] : vector<8x16xi32> to vector<16xi32>
      %80 = vector.shape_cast %79 : vector<16xi32> to vector<1x16xi32>
      %81 = vector.broadcast %80 : vector<1x16xi32> to vector<8x16xi32>
      %82 = arith.cmpi eq, %30, %81 : vector<8x16xi32>
      %83 = math.sqrt %74 : vector<1x16xf32>
      %cst_18 = arith.constant 9.99999993E-9 : f32
      %84 = vector.broadcast %cst_18 : f32 to vector<1x16xf32>
      %85 = arith.addf %83, %84 : vector<1x16xf32>
      %86 = tpu.reciprocal %85 {approx = true} : vector<1x16xf32> -> vector<1x16xf32>
      %87 = vector.shape_cast %86 : vector<1x16xf32> to vector<1x16xf32>
      %88 = vector.broadcast %87 : vector<1x16xf32> to vector<8x16xf32>
      %89 = arith.select %82, %88, %69 : vector<8x16xi1>, vector<8x16xf32>
      %90 = arith.addf %70, %86 : vector<1x16xf32>
      %cst_19 = arith.constant dense<0.000000e+00> : vector<8x16xf32>
      %91 = tpu.matmul %9, %89, %cst_19 {dimension_numbers = #tpu.dot_dimension_numbers<[1], [0], [0], [1], [0, 0, 1, 1], [], []>} : vector<8x8xf32>, vector<8x16xf32>, vector<8x16xf32> -> vector<8x16xf32>
      %92 = tpu.reciprocal %90 {approx = true} : vector<1x16xf32> -> vector<1x16xf32>
      %93 = vector.broadcast %92 : vector<1x16xf32> to vector<8x16xf32>
      %94 = arith.mulf %91, %93 : vector<8x16xf32>
      %c0_20 = arith.constant 0 : index
      %c0_21 = arith.constant 0 : index
      %95 = vector.load %arg10[%c0_20, %c0_21] : memref<12x16xf32, #tpu.memory_space<vmem>>, vector<8x16xf32>
      tpu.vector_store %arg10[%c0_20, %c0_21], %94 {strides = array<i32>} : memref<12x16xf32, #tpu.memory_space<vmem>>, vector<8x16xf32>,
      %96 = arith.index_cast %arg11 : i32 to index
      %c0_22 = arith.constant 0 : index
      %c0_23 = arith.constant 0 : index
      %97 = vector.load %arg4[%96, %c0_22, %c0_23] : memref<3x4x16xf32, #tpu.memory_space<vmem>>, vector<1x4x16xf32>
      %98 = vector.shape_cast %97 : vector<1x4x16xf32> to vector<4x16xf32>
      %c8 = arith.constant 8 : index
      %c0_24 = arith.constant 0 : index
      %99 = vector.load %arg10[%c8, %c0_24] : memref<12x16xf32, #tpu.memory_space<vmem>>, vector<4x16xf32>
      tpu.vector_store %arg10[%c8, %c0_24], %98 {strides = array<i32>} : memref<12x16xf32, #tpu.memory_space<vmem>>, vector<4x16xf32>,
      %c0_25 = arith.constant 0 : index
      %c0_26 = arith.constant 0 : index
      %100 = vector.load %arg5[%c0_25, %c0_26] : memref<32x12xf32, #tpu.memory_space<vmem>>, vector<32x12xf32>
      %c0_27 = arith.constant 0 : index
      %c0_28 = arith.constant 0 : index
      %101 = vector.load %arg10[%c0_27, %c0_28] : memref<12x16xf32, #tpu.memory_space<vmem>>, vector<12x16xf32>
      %cst_29 = arith.constant dense<0.000000e+00> : vector<32x16xf32>
      %102 = tpu.matmul %100, %101, %cst_29 {dimension_numbers = #tpu.dot_dimension_numbers<[1], [0], [0], [1], [0, 0, 1, 1], [], []>} : vector<32x12xf32>, vector<12x16xf32>, vector<32x16xf32> -> vector<32x16xf32>
      %c0_30 = arith.constant 0 : index
      %c0_31 = arith.constant 0 : index
      %103 = vector.load %arg6[%c0_30, %c0_31] : memref<32x1xf32, #tpu.memory_space<vmem>>, vector<32x1xf32>
      %104 = vector.broadcast %103 : vector<32x1xf32> to vector<32x16xf32>
      %105 = arith.addf %102, %104 : vector<32x16xf32>
      %cst_32 = arith.constant 0.000000e+00 : f32
      %106 = vector.broadcast %cst_32 : f32 to vector<32x16xf32>
      %107 = arith.maximumf %105, %106 : vector<32x16xf32>
      %c0_33 = arith.constant 0 : index
      %c0_34 = arith.constant 0 : index
      %108 = vector.load %arg7[%c0_33, %c0_34] : memref<16x32xf32, #tpu.memory_space<vmem>>, vector<16x32xf32>
      %cst_35 = arith.constant dense<0.000000e+00> : vector<16x16xf32>
      %109 = tpu.matmul %108, %107, %cst_35 {dimension_numbers = #tpu.dot_dimension_numbers<[1], [0], [0], [1], [0, 0, 1, 1], [], []>} : vector<16x32xf32>, vector<32x16xf32>, vector<16x16xf32> -> vector<16x16xf32>
      %c0_36 = arith.constant 0 : index
      %c0_37 = arith.constant 0 : index
      %110 = vector.load %arg8[%c0_36, %c0_37] : memref<16x1xf32, #tpu.memory_space<vmem>>, vector<16x1xf32>
      %111 = vector.broadcast %110 : vector<16x1xf32> to vector<16x16xf32>
      %112 = arith.addf %109, %111 : vector<16x16xf32>
      %cst_38 = arith.constant 0.000000e+00 : f32
      %113 = vector.broadcast %cst_38 : f32 to vector<16x16xf32>
      %114 = arith.maximumf %112, %113 : vector<16x16xf32>
      %115 = arith.index_cast %arg11 : i32 to index
      %c0_39 = arith.constant 0 : index
      %c0_40 = arith.constant 0 : index
      %116 = vector.load %arg9[%115, %c0_39, %c0_40] : memref<3x16x16xf32, #tpu.memory_space<vmem>>, vector<1x16x16xf32>
      %117 = vector.shape_cast %116 : vector<1x16x16xf32> to vector<16x16xf32>
      %118 = vector.shape_cast %114 : vector<16x16xf32> to vector<1x16x16xf32>
      tpu.vector_store %arg9[%115, %c0_39, %c0_40], %118 {strides = array<i32>} : memref<3x16x16xf32, #tpu.memory_space<vmem>>, vector<1x16x16xf32>,
    }
    %c3_i32_0 = arith.constant 3 : i32
    return
  }
  func.func @transform_0(%arg0: i32) -> (i32, i32, i32) {
    %c0_i32 = arith.constant 0 : i32
    %c0_i32_0 = arith.constant 0 : i32
    %c0_i32_1 = arith.constant 0 : i32
    return %arg0, %c0_i32, %c0_i32_0 : i32, i32, i32
  }
  func.func @transform_1(%arg0: i32) -> (i32, i32, i32) {
    %c0_i32 = arith.constant 0 : i32
    %c0_i32_0 = arith.constant 0 : i32
    %c0_i32_1 = arith.constant 0 : i32
    return %arg0, %c0_i32, %c0_i32_0 : i32, i32, i32
  }
  func.func @transform_2(%arg0: i32) -> (i32, i32, i32) {
    %c0_i32 = arith.constant 0 : i32
    %c0_i32_0 = arith.constant 0 : i32
    %c0_i32_1 = arith.constant 0 : i32
    return %arg0, %c0_i32, %c0_i32_0 : i32, i32, i32
  }
  func.func @transform_3(%arg0: i32) -> (i32, i32, i32) {
    %c0_i32 = arith.constant 0 : i32
    %c0_i32_0 = arith.constant 0 : i32
    %c0_i32_1 = arith.constant 0 : i32
    return %arg0, %c0_i32, %c0_i32_0 : i32, i32, i32
  }
  func.func @transform_4(%arg0: i32) -> (i32, i32) {
    %c0_i32 = arith.constant 0 : i32
    %c0_i32_0 = arith.constant 0 : i32
    %c0_i32_1 = arith.constant 0 : i32
    return %c0_i32, %c0_i32_0 : i32, i32
  }
  func.func @transform_5(%arg0: i32) -> (i32, i32) {
    %c0_i32 = arith.constant 0 : i32
    %c0_i32_0 = arith.constant 0 : i32
    %c0_i32_1 = arith.constant 0 : i32
    return %c0_i32, %c0_i32_0 : i32, i32
  }
  func.func @transform_6(%arg0: i32) -> (i32, i32) {
    %c0_i32 = arith.constant 0 : i32
    %c0_i32_0 = arith.constant 0 : i32
    %c0_i32_1 = arith.constant 0 : i32
    return %c0_i32, %c0_i32_0 : i32, i32
  }
  func.func @transform_7(%arg0: i32) -> (i32, i32) {
    %c0_i32 = arith.constant 0 : i32
    %c0_i32_0 = arith.constant 0 : i32
    %c0_i32_1 = arith.constant 0 : i32
    return %c0_i32, %c0_i32_0 : i32, i32
  }
  func.func @transform_8(%arg0: i32) -> (i32, i32, i32) {
    %c0_i32 = arith.constant 0 : i32
    %c0_i32_0 = arith.constant 0 : i32
    %c0_i32_1 = arith.constant 0 : i32
    return %arg0, %c0_i32, %c0_i32_0 : i32, i32, i32
  }
}

</mosaic_0001>

<llo_original>
// kernel: p4d_trans_conv.1
$region0: #{p4d_trans_conv.1}
  #allocation0 [shape = 'u32[]', space=smem, size = 0x4, offset = 0x4, fixed_abs, tag = 'smem constant byte address 0x4 - core index']
  #allocation1 [shape = 'u32[144,128]{1,0:T(1,128)}', space=vmem, size = 0x12000, scoped, tag = 'internal scratch']
  #allocation2 [shape = 'f32[12,16]{1,0:T(8,128)}', space=vmem, size = 0x2000, scoped, tag = 'scratch operand']
  %s0 = inlined_call_operand.vmem [shape: f32[6,8,3], index: 0, kind: input, shape index: {}]
  %s1 = inlined_call_operand.vmem [shape: f32[6,3,16], index: 1, kind: input, shape index: {}]
  %s2 = inlined_call_operand.vmem [shape: f32[6,8,8], index: 2, kind: input, shape index: {}]
  %s3 = inlined_call_operand.vmem [shape: f32[6,4,16], index: 3, kind: input, shape index: {}]
  %s4 = inlined_call_operand.vmem [shape: f32[32,12], index: 4, kind: input, shape index: {}]
  %s5 = inlined_call_operand.vmem [shape: f32[32,1], index: 5, kind: input, shape index: {}]
  %s6 = inlined_call_operand.vmem [shape: f32[16,32], index: 6, kind: input, shape index: {}]
  %s7 = inlined_call_operand.vmem [shape: f32[16,1], index: 7, kind: input, shape index: {}]
  %s8 = inlined_call_operand.hbm [shape: f32[6,16,16], index: 8, kind: output, shape index: {}]
  %s9 = sld [smem:[#allocation0]]
  $region72: #{p4d_trans_conv.1} parent=0
    _
  %s11 = ssub.s32 1, %s9
  %s12 = scalar_select 0, %s11, %s9
  $region1: #{p4d_trans_conv.1} parent=0
    #allocation3 [shape = 'u8[49152]{0}', space=vmem, size = 0xc000, scoped, tag = 'output window, operand 0']
    #allocation4 [shape = 's32[2]{0}', space=sflag, size = 0x8, scoped, tag = 'scoped memory for p4d_trans_conv.1']
    %13 = vsyncpa [#allocation4], 0
    %s14 = scalar_lea.sflag [#allocation4], 1
    %15 = vsyncpa %s14, 0
    loop: start=0, step=1, limit=4
    $region2: #{p4d_trans_conv.1} parent=1 // loop_pre_header
      _
    $region3: #{p4d_trans_conv.1} parent=1 // loop_header
      %s17 = sphi 0, %s21
      %p18 = scmp.ge.s32.totalorder %s17, 4
      %s27 = sphi 0, %s29
      %s30 = sphi 0, %s27
      %s31 = sphi 0, %s30
      %s47 = sphi 0, %s31
      %s53 = sphi 0, %s55
      %s56 = sphi 0, %s53
      %s57 = sphi 0, %s56
      %s73 = sphi 0, %s57
      %s79 = sphi 0, %s81
      %s82 = sphi 0, %s79
      %s83 = sphi 0, %s82
      %s99 = sphi 0, %s83
      %s105 = sphi 0, %s107
      %s108 = sphi 0, %s105
      %s109 = sphi 0, %s108
      %s125 = sphi 0, %s109
      %s129 = sphi 0, %s129
      %s131 = sphi 0, %s129
      %s132 = sphi 0, %s131
      %s146 = sphi 0, %s132
      %s150 = sphi 0, %s150
      %s152 = sphi 0, %s150
      %s153 = sphi 0, %s152
      %s167 = sphi 0, %s153
      %s171 = sphi 0, %s171
      %s173 = sphi 0, %s171
      %s174 = sphi 0, %s173
      %s188 = sphi 0, %s174
      %s192 = sphi 0, %s192
      %s194 = sphi 0, %s192
      %s195 = sphi 0, %s194
      %s209 = sphi 0, %s195
      %s215 = sphi 0, %s217
      %s218 = sphi 0, %s215
      %s219 = sphi 0, %s218
      %s235 = sphi 0, %s219
    $region4: #{p4d_trans_conv.1} parent=1 // loop_header_branch
      %20 = sbr.rel (%p18) target = $region8
    $region5: #{p4d_trans_conv.1} parent=1 // loop_body
      %s22 = ssub.s32 %s17, 1
      %s23 = ssub.s32 %s17, 2
      %s24 = sadd.s32 %s17, 1
      %s25 = ssub.s32 %s17, %s24
      %p26 = scmp.eq.s32.totalorder %s25, 0
      %s28 = sadd.s32 %s27, 1
      %s29 = scalar_select %p26, %s27, %s28
      %p32 = pneg %p26
      %p33 = scmp.eq.s32.totalorder %s17, 1
      %p34 = por %p32, %p33
      %p35 = scmp.ne.s32.totalorder %s27, %s30
      %p36 = scmp.eq.s32.totalorder %s17, 0
      %p37 = por %p35, %p36
      %p38 = scmp.ne.s32.totalorder %s27, %s30
      %p39 = scmp.eq.s32.totalorder %s22, 1
      %p40 = por %p38, %p39
      %p41 = scmp.ne.s32.totalorder %s30, %s31
      %p42 = scmp.eq.s32.totalorder %s22, 0
      %p43 = por %p41, %p42
      %p44 = scmp.ne.s32.totalorder %s30, %s31
      %p45 = scmp.eq.s32.totalorder %s23, 1
      %p46 = por %p44, %p45
      %p48 = scmp.ne.s32.totalorder %s31, %s47
      %p49 = scmp.eq.s32.totalorder %s23, 0
      %p50 = por %p48, %p49
      %s51 = ssub.s32 %s17, %s24
      %p52 = scmp.eq.s32.totalorder %s51, 0
      %s54 = sadd.s32 %s53, 1
      %s55 = scalar_select %p52, %s53, %s54
      %p58 = pneg %p52
      %p59 = scmp.eq.s32.totalorder %s17, 1
      %p60 = por %p58, %p59
      %p61 = scmp.ne.s32.totalorder %s53, %s56
      %p62 = scmp.eq.s32.totalorder %s17, 0
      %p63 = por %p61, %p62
      %p64 = scmp.ne.s32.totalorder %s53, %s56
      %p65 = scmp.eq.s32.totalorder %s22, 1
      %p66 = por %p64, %p65
      %p67 = scmp.ne.s32.totalorder %s56, %s57
      %p68 = scmp.eq.s32.totalorder %s22, 0
      %p69 = por %p67, %p68
      %p70 = scmp.ne.s32.totalorder %s56, %s57
      %p71 = scmp.eq.s32.totalorder %s23, 1
      %p72 = por %p70, %p71
      %p74 = scmp.ne.s32.totalorder %s57, %s73
      %p75 = scmp.eq.s32.totalorder %s23, 0
      %p76 = por %p74, %p75
      %s77 = ssub.s32 %s17, %s24
      %p78 = scmp.eq.s32.totalorder %s77, 0
      %s80 = sadd.s32 %s79, 1
      %s81 = scalar_select %p78, %s79, %s80
      %p84 = pneg %p78
      %p85 = scmp.eq.s32.totalorder %s17, 1
      %p86 = por %p84, %p85
      %p87 = scmp.ne.s32.totalorder %s79, %s82
      %p88 = scmp.eq.s32.totalorder %s17, 0
      %p89 = por %p87, %p88
      %p90 = scmp.ne.s32.totalorder %s79, %s82
      %p91 = scmp.eq.s32.totalorder %s22, 1
      %p92 = por %p90, %p91
      %p93 = scmp.ne.s32.totalorder %s82, %s83
      %p94 = scmp.eq.s32.totalorder %s22, 0
      %p95 = por %p93, %p94
      %p96 = scmp.ne.s32.totalorder %s82, %s83
      %p97 = scmp.eq.s32.totalorder %s23, 1
      %p98 = por %p96, %p97
      %p100 = scmp.ne.s32.totalorder %s83, %s99
      %p101 = scmp.eq.s32.totalorder %s23, 0
      %p102 = por %p100, %p101
      %s103 = ssub.s32 %s17, %s24
      %p104 = scmp.eq.s32.totalorder %s103, 0
      %s106 = sadd.s32 %s105, 1
      %s107 = scalar_select %p104, %s105, %s106
      %p110 = pneg %p104
      %p111 = scmp.eq.s32.totalorder %s17, 1
      %p112 = por %p110, %p111
      %p113 = scmp.ne.s32.totalorder %s105, %s108
      %p114 = scmp.eq.s32.totalorder %s17, 0
      %p115 = por %p113, %p114
      %p116 = scmp.ne.s32.totalorder %s105, %s108
      %p117 = scmp.eq.s32.totalorder %s22, 1
      %p118 = por %p116, %p117
      %p119 = scmp.ne.s32.totalorder %s108, %s109
      %p120 = scmp.eq.s32.totalorder %s22, 0
      %p121 = por %p119, %p120
      %p122 = scmp.ne.s32.totalorder %s108, %s109
      %p123 = scmp.eq.s32.totalorder %s23, 1
      %p124 = por %p122, %p123
      %p126 = scmp.ne.s32.totalorder %s109, %s125
      %p127 = scmp.eq.s32.totalorder %s23, 0
      %p128 = por %p126, %p127
      %s130 = sadd.s32 %s129, 1
      %p133 = scmp.eq.s32.totalorder %s17, 1
      %p134 = scmp.ne.s32.totalorder %s129, %s131
      %p135 = scmp.eq.s32.totalorder %s17, 0
      %p136 = por %p134, %p135
      %p137 = scmp.ne.s32.totalorder %s129, %s131
      %p138 = scmp.eq.s32.totalorder %s22, 1
      %p139 = por %p137, %p138
      %p140 = scmp.ne.s32.totalorder %s131, %s132
      %p141 = scmp.eq.s32.totalorder %s22, 0
      %p142 = por %p140, %p141
      %p143 = scmp.ne.s32.totalorder %s131, %s132
      %p144 = scmp.eq.s32.totalorder %s23, 1
      %p145 = por %p143, %p144
      %p147 = scmp.ne.s32.totalorder %s132, %s146
      %p148 = scmp.eq.s32.totalorder %s23, 0
      %p149 = por %p147, %p148
      %s151 = sadd.s32 %s150, 1
      %p154 = scmp.eq.s32.totalorder %s17, 1
      %p155 = scmp.ne.s32.totalorder %s150, %s152
      %p156 = scmp.eq.s32.totalorder %s17, 0
      %p157 = por %p155, %p156
      %p158 = scmp.ne.s32.totalorder %s150, %s152
      %p159 = scmp.eq.s32.totalorder %s22, 1
      %p160 = por %p158, %p159
      %p161 = scmp.ne.s32.totalorder %s152, %s153
      %p162 = scmp.eq.s32.totalorder %s22, 0
      %p163 = por %p161, %p162
      %p164 = scmp.ne.s32.totalorder %s152, %s153
      %p165 = scmp.eq.s32.totalorder %s23, 1
      %p166 = por %p164, %p165
      %p168 = scmp.ne.s32.totalorder %s153, %s167
      %p169 = scmp.eq.s32.totalorder %s23, 0
      %p170 = por %p168, %p169
      %s172 = sadd.s32 %s171, 1
      %p175 = scmp.eq.s32.totalorder %s17, 1
      %p176 = scmp.ne.s32.totalorder %s171, %s173
      %p177 = scmp.eq.s32.totalorder %s17, 0
      %p178 = por %p176, %p177
      %p179 = scmp.ne.s32.totalorder %s171, %s173
      %p180 = scmp.eq.s32.totalorder %s22, 1
      %p181 = por %p179, %p180
      %p182 = scmp.ne.s32.totalorder %s173, %s174
      %p183 = scmp.eq.s32.totalorder %s22, 0
      %p184 = por %p182, %p183
      %p185 = scmp.ne.s32.totalorder %s173, %s174
      %p186 = scmp.eq.s32.totalorder %s23, 1
      %p187 = por %p185, %p186
      %p189 = scmp.ne.s32.totalorder %s174, %s188
      %p190 = scmp.eq.s32.totalorder %s23, 0
      %p191 = por %p189, %p190
      %s193 = sadd.s32 %s192, 1
      %p196 = scmp.eq.s32.totalorder %s17, 1
      %p197 = scmp.ne.s32.totalorder %s192, %s194
      %p198 = scmp.eq.s32.totalorder %s17, 0
      %p199 = por %p197, %p198
      %p200 = scmp.ne.s32.totalorder %s192, %s194
      %p201 = scmp.eq.s32.totalorder %s22, 1
      %p202 = por %p200, %p201
      %p203 = scmp.ne.s32.totalorder %s194, %s195
      %p204 = scmp.eq.s32.totalorder %s22, 0
      %p205 = por %p203, %p204
      %p206 = scmp.ne.s32.totalorder %s194, %s195
      %p207 = scmp.eq.s32.totalorder %s23, 1
      %p208 = por %p206, %p207
      %p210 = scmp.ne.s32.totalorder %s195, %s209
      %p211 = scmp.eq.s32.totalorder %s23, 0
      %p212 = por %p210, %p211
      %s213 = ssub.s32 %s17, %s24
      %p214 = scmp.eq.s32.totalorder %s213, 0
      %s216 = sadd.s32 %s215, 1
      %s217 = scalar_select %p214, %s215, %s216
      %p220 = pneg %p214
      %p221 = scmp.eq.s32.totalorder %s17, 1
      %p222 = por %p220, %p221
      %p223 = scmp.ne.s32.totalorder %s215, %s218
      %p224 = scmp.eq.s32.totalorder %s17, 0
      %p225 = por %p223, %p224
      %p226 = scmp.ne.s32.totalorder %s215, %s218
      %p227 = scmp.eq.s32.totalorder %s22, 1
      %p228 = por %p226, %p227
      %p229 = scmp.ne.s32.totalorder %s218, %s219
      %p230 = scmp.eq.s32.totalorder %s22, 0
      %p231 = por %p229, %p230
      %p232 = scmp.ne.s32.totalorder %s218, %s219
      %p233 = scmp.eq.s32.totalorder %s23, 1
      %p234 = por %p232, %p233
      %p236 = scmp.ne.s32.totalorder %s219, %s235
      %p237 = scmp.eq.s32.totalorder %s23, 0
      %p238 = por %p236, %p237
      %p239 = scmp.le.s32.totalorder 1, %s17
      %p240 = scmp.lt.s32.totalorder %s17, 3
      %p241 = pnand %p239, %p240
      %p242 = pneg %p241
      // Predicated region
      $region9: #{p4d_trans_conv.1} parent=5 // pred_check
        _
      $region10: #{p4d_trans_conv.1} parent=5 // pred_check_branch
        %244 = sbr.rel (%p241) target = $region12
      $region11: #{p4d_trans_conv.1} parent=5 // pred_region
        %s245 = ssub.s32 %s17, 1
        // Predicated region
        $region13: #{p4d_trans_conv.1} parent=11 // pred_check
          %p246 = pneg %p142
        $region14: #{p4d_trans_conv.1} parent=11 // pred_check_branch
          %248 = sbr.rel (%p246) target = $region16
        $region15: #{p4d_trans_conv.1} parent=11 // pred_region
          _
        $region16: #{p4d_trans_conv.1} parent=11 // pred_fallthru
          _
        // Predicated region
        $region17: #{p4d_trans_conv.1} parent=11 // pred_check
          %p249 = pneg %p163
        $region18: #{p4d_trans_conv.1} parent=11 // pred_check_branch
          %251 = sbr.rel (%p249) target = $region20
        $region19: #{p4d_trans_conv.1} parent=11 // pred_region
          _
        $region20: #{p4d_trans_conv.1} parent=11 // pred_fallthru
          _
        // Predicated region
        $region21: #{p4d_trans_conv.1} parent=11 // pred_check
          %p252 = pneg %p184
        $region22: #{p4d_trans_conv.1} parent=11 // pred_check_branch
          %254 = sbr.rel (%p252) target = $region24
        $region23: #{p4d_trans_conv.1} parent=11 // pred_region
          _
        $region24: #{p4d_trans_conv.1} parent=11 // pred_fallthru
          _
        // Predicated region
        $region25: #{p4d_trans_conv.1} parent=11 // pred_check
          %p255 = pneg %p205
        $region26: #{p4d_trans_conv.1} parent=11 // pred_check_branch
          %257 = sbr.rel (%p255) target = $region28
        $region27: #{p4d_trans_conv.1} parent=11 // pred_region
          _
        $region28: #{p4d_trans_conv.1} parent=11 // pred_fallthru
          _
      $region12: #{p4d_trans_conv.1} parent=5 // pred_fallthru
        _
      %p258 = scmp.lt.s32.totalorder %s17, 2
      // Predicated region
      $region29: #{p4d_trans_conv.1} parent=5 // pred_check
        %p259 = pneg %p258
      $region30: #{p4d_trans_conv.1} parent=5 // pred_check_branch
        %261 = sbr.rel (%p259) target = $region32
      $region31: #{p4d_trans_conv.1} parent=5 // pred_region
        // Predicated region
        $region33: #{p4d_trans_conv.1} parent=31 // pred_check
          %p262 = pneg %p37
        $region34: #{p4d_trans_conv.1} parent=31 // pred_check_branch
          %264 = sbr.rel (%p262) target = $region36
        $region35: #{p4d_trans_conv.1} parent=31 // pred_region
          %s265 = smul.u32 3, %s17
          %p266 = scmp.lt.s32.totalorder %s265, 5
          %s267 = scalar_select %p266, %s265, 5
          %s268 = smul.addr %s267, 8
          %s269 = scalar_lea.vmem %s0, %s268
          %s270 = smul.u32 3, %s17
        $region36: #{p4d_trans_conv.1} parent=31 // pred_fallthru
          _
        // Predicated region
        $region37: #{p4d_trans_conv.1} parent=31 // pred_check
          %p271 = pneg %p63
        $region38: #{p4d_trans_conv.1} parent=31 // pred_check_branch
          %273 = sbr.rel (%p271) target = $region40
        $region39: #{p4d_trans_conv.1} parent=31 // pred_region
          %s274 = smul.u32 3, %s17
          %p275 = scmp.lt.s32.totalorder %s274, 5
          %s276 = scalar_select %p275, %s274, 5
          %s277 = smul.addr %s276, 4
          %s278 = scalar_lea.vmem %s1, %s277
          %s279 = smul.u32 3, %s17
        $region40: #{p4d_trans_conv.1} parent=31 // pred_fallthru
          _
        // Predicated region
        $region41: #{p4d_trans_conv.1} parent=31 // pred_check
          %p280 = pneg %p89
        $region42: #{p4d_trans_conv.1} parent=31 // pred_check_branch
          %282 = sbr.rel (%p280) target = $region44
        $region43: #{p4d_trans_conv.1} parent=31 // pred_region
          %s283 = smul.u32 3, %s17
          %p284 = scmp.lt.s32.totalorder %s283, 5
          %s285 = scalar_select %p284, %s283, 5
          %s286 = smul.addr %s285, 8
          %s287 = scalar_lea.vmem %s2, %s286
          %s288 = smul.u32 3, %s17
        $region44: #{p4d_trans_conv.1} parent=31 // pred_fallthru
          _
        // Predicated region
        $region45: #{p4d_trans_conv.1} parent=31 // pred_check
          %p289 = pneg %p115
        $region46: #{p4d_trans_conv.1} parent=31 // pred_check_branch
          %291 = sbr.rel (%p289) target = $region48
        $region47: #{p4d_trans_conv.1} parent=31 // pred_region
          %s292 = smul.u32 3, %s17
          %p293 = scmp.lt.s32.totalorder %s292, 5
          %s294 = scalar_select %p293, %s292, 5
          %s295 = smul.addr %s294, 4
          %s296 = scalar_lea.vmem %s3, %s295
          %s297 = smul.u32 3, %s17
        $region48: #{p4d_trans_conv.1} parent=31 // pred_fallthru
          _
      $region32: #{p4d_trans_conv.1} parent=5 // pred_fallthru
        _
      %p298 = scmp.le.s32.totalorder 1, %s17
      %p299 = scmp.lt.s32.totalorder %s17, 3
      %p300 = pnand %p298, %p299
      %p301 = pneg %p300
      // Predicated region
      $region49: #{p4d_trans_conv.1} parent=5 // pred_check
        _
      $region50: #{p4d_trans_conv.1} parent=5 // pred_check_branch
        %303 = sbr.rel (%p300) target = $region52
      $region51: #{p4d_trans_conv.1} parent=5 // pred_region
        %s304 = ssub.s32 %s17, 1
        %s305 = smul.u32 3, %s22
        %p306 = scmp.lt.s32.totalorder %s305, 5
        %s307 = scalar_select %p306, %s305, 5
        %s308 = smul.addr %s307, 8
        %s309 = scalar_lea.vmem %s0, %s308
        %p310 = pneg %p43
        %p311 = pneg %p40
        %s312 = smul.u32 3, %s22
        %p313 = scmp.lt.s32.totalorder %s312, 5
        %s314 = scalar_select %p313, %s312, 5
        %s315 = smul.addr %s314, 4
        %s316 = scalar_lea.vmem %s1, %s315
        %p317 = pneg %p69
        %p318 = pneg %p66
        %s319 = smul.u32 3, %s22
        %p320 = scmp.lt.s32.totalorder %s319, 5
        %s321 = scalar_select %p320, %s319, 5
        %s322 = smul.addr %s321, 8
        %s323 = scalar_lea.vmem %s2, %s322
        %p324 = pneg %p95
        %p325 = pneg %p92
        %s326 = smul.u32 3, %s22
        %p327 = scmp.lt.s32.totalorder %s326, 5
        %s328 = scalar_select %p327, %s326, 5
        %s329 = smul.addr %s328, 4
        %s330 = scalar_lea.vmem %s3, %s329
        %p331 = pneg %p121
        %p332 = pneg %p118
        %p333 = pneg %p142
        %p334 = pneg %p139
        %p335 = pneg %p163
        %p336 = pneg %p160
        %p337 = pneg %p184
        %p338 = pneg %p181
        %p339 = pneg %p205
        %p340 = pneg %p202
        %p341 = pneg %p231
        %p342 = pneg %p228
        %s343 = sand.u32 %s218, 1
        %s344 = scalar_lea.sflag [#allocation4], %s343
        %s345 = sand.u32 %s218, 1
        %s346 = smul.addr %s345, 48
        %s347 = scalar_lea.vmem [#allocation3], %s346
        %s348 = smul.u32 3, %s22
        %p349 = scmp.lt.s32.totalorder %s348, 5
        %s350 = scalar_select %p349, %s348, 5
        %s351 = smul.addr %s350, 8
        %s352 = scalar_lea.vmem %s0, %s351
        %s353 = smul.u32 3, %s22
        %s354 = smul.u32 3, %s22
        %p355 = scmp.lt.s32.totalorder %s354, 5
        %s356 = scalar_select %p355, %s354, 5
        %s357 = smul.addr %s356, 4
        %s358 = scalar_lea.vmem %s1, %s357
        %s359 = smul.u32 3, %s22
        %s360 = smul.u32 3, %s22
        %p361 = scmp.lt.s32.totalorder %s360, 5
        %s362 = scalar_select %p361, %s360, 5
        %s363 = smul.addr %s362, 8
        %s364 = scalar_lea.vmem %s2, %s363
        %s365 = smul.u32 3, %s22
        %s366 = smul.u32 3, %s22
        %p367 = scmp.lt.s32.totalorder %s366, 5
        %s368 = scalar_select %p367, %s366, 5
        %s369 = smul.addr %s368, 4
        %s370 = scalar_lea.vmem %s3, %s369
        %s371 = smul.u32 3, %s22
        %s372 = smul.u32 3, %s22
        loop: start=0, step=1, limit=3
        $region53: #{p4d_trans_conv.1} parent=51 // loop_pre_header
          _
        $region54: #{p4d_trans_conv.1} parent=51 // loop_header
          %s374 = sphi 0, %s378
          %p375 = scmp.ge.s32.totalorder %s374, 3
        $region55: #{p4d_trans_conv.1} parent=51 // loop_header_branch
          %377 = sbr.rel (%p375) target = $region59
        $region56: #{p4d_trans_conv.1} parent=51 // loop_body
          %s379 = smul.u32 %s374, 8
          %s380 = scalar_lea.vmem %s352, %s379
          %v381 = vld [vmem:[%s380] sm:$0xff]
          %s382 = scalar_lea.vmem %s364, %s379
          %v383 = vld [vmem:[%s382] sm:$0xff]
          %s384 = smul.u32 %s374, 4
          %s385 = scalar_lea.vmem %s358, %s384
          %v386 = vld [vmem:[%s385] sm:$0x7]
          %388 = vset.pattern.permute.xlu0 0
          %389 = vperm.xlu0 %388, %v381
          %v390 = vpop.permute.xlu0 %389
          %v392 = vlaneseq
          %v393 = vshrl.u32 %v392, 7
          %v394 = vsub.s32 0, %v393
          %v395 = vrot.slane %v386, %v394
          %v396 = vsub.f32 %v390, %v395
          %v397 = vmul.f32 %v396, %v396
          %398 = vset.pattern.permute.xlu0 1
          %399 = vperm.xlu0 %398, %v381
          %v400 = vpop.permute.xlu0 %399
          %v402 = vlaneseq
          %v403 = vshrl.u32 %v402, 7
          %v404 = vsub.s32 1, %v403
          %v405 = vrot.slane %v386, %v404
          %v406 = vsub.f32 %v400, %v405
          %v407 = vmul.f32 %v406, %v406
          %v408 = vadd.f32 %v397, %v407
          %409 = vset.pattern.permute.xlu0 2
          %410 = vperm.xlu0 %409, %v381
          %v411 = vpop.permute.xlu0 %410
          %v413 = vlaneseq
          %v414 = vshrl.u32 %v413, 7
          %v415 = vsub.s32 2, %v414
          %v416 = vrot.slane %v386, %v415
          %v417 = vsub.f32 %v411, %v416
          %v418 = vmul.f32 %v417, %v417
          %v419 = vadd.f32 %v408, %v418
          %v420 = vlaneseq
          %v421 = vshrl.u32 %v420, 7
          %vm422 = vcmask 130048
          %v423 = vsel %vm422, %v419, inf
          %v424 = vrot.slane %v423, 4
          %v425 = vmin.f32 %v423, %v424
          %v426 = vrot.slane %v425, 2
          %v427 = vmin.f32 %v425, %v426
          %v428 = vrot.slane %v427, 1
          %v429 = vmin.f32 %v427, %v428
          %vm430 = vcmp.eq.f32.partialorder %v419, %v429
          %v431 = vsel %vm430, %v421, 8
          %v432 = vsel %vm422, %v431, 2147483647
          %v433 = vrot.slane %v432, 4
          %vm434 = vcmp.lt.s32.totalorder %v432, %v433
          %v435 = vsel %vm434, %v432, %v433
          %v436 = vrot.slane %v435, 2
          %vm437 = vcmp.lt.s32.totalorder %v435, %v436
          %v438 = vsel %vm437, %v435, %v436
          %v439 = vrot.slane %v438, 1
          %vm440 = vcmp.lt.s32.totalorder %v438, %v439
          %v441 = vsel %vm440, %v438, %v439
          %vm442 = vcmp.eq.s32.totalorder %v421, %v441
          %v443 = vrsqrt.pop %v429
          %v444 = vmul.f32 %v429, %v443
          %vm445 = vcmp.eq.f32.partialorder %v429, inf
          %v446 = vsel %vm445, %v429, %v444
          %vm447 = vcmp.eq.f32.partialorder %v429, 0.0
          %v448 = vand.u32 %v429, 2147483648
          %v449 = vsel %vm447, %v448, %v446
          %v450 = vadd.f32 %v449, 1e-08
          %v451 = vrcp.pop %v450
          %v452 = vsel %vm442, %v451, 0.0
          %v453 = vadd.f32 %v451, 0.0
          %v454 = vsel %vm442, 1e+30, %v419
          %v455 = vsel %vm422, %v454, inf
          %v456 = vrot.slane %v455, 4
          %v457 = vmin.f32 %v455, %v456
          %v458 = vrot.slane %v457, 2
          %v459 = vmin.f32 %v457, %v458
          %v460 = vrot.slane %v459, 1
          %v461 = vmin.f32 %v459, %v460
          %vm462 = vcmp.eq.f32.partialorder %v454, %v461
          %v463 = vsel %vm462, %v421, 8
          %v464 = vsel %vm422, %v463, 2147483647
          %v465 = vrot.slane %v464, 4
          %vm466 = vcmp.lt.s32.totalorder %v464, %v465
          %v467 = vsel %vm466, %v464, %v465
          %v468 = vrot.slane %v467, 2
          %vm469 = vcmp.lt.s32.totalorder %v467, %v468
          %v470 = vsel %vm469, %v467, %v468
          %v471 = vrot.slane %v470, 1
          %vm472 = vcmp.lt.s32.totalorder %v470, %v471
          %v473 = vsel %vm472, %v470, %v471
          %vm474 = vcmp.eq.s32.totalorder %v421, %v473
          %v475 = vrsqrt.pop %v461
          %v476 = vmul.f32 %v461, %v475
          %vm477 = vcmp.eq.f32.partialorder %v461, inf
          %v478 = vsel %vm477, %v461, %v476
          %vm479 = vcmp.eq.f32.partialorder %v461, 0.0
          %v480 = vand.u32 %v461, 2147483648
          %v481 = vsel %vm479, %v480, %v478
          %v482 = vadd.f32 %v481, 1e-08
          %v483 = vrcp.pop %v482
          %v484 = vsel %vm474, %v483, %v452
          %v485 = vadd.f32 %v453, %v483
          %v486 = vsel %vm474, 1e+30, %v454
          %v487 = vsel %vm422, %v486, inf
          %v488 = vrot.slane %v487, 4
          %v489 = vmin.f32 %v487, %v488
          %v490 = vrot.slane %v489, 2
          %v491 = vmin.f32 %v489, %v490
          %v492 = vrot.slane %v491, 1
          %v493 = vmin.f32 %v491, %v492
          %vm494 = vcmp.eq.f32.partialorder %v486, %v493
          %v495 = vsel %vm494, %v421, 8
          %v496 = vsel %vm422, %v495, 2147483647
          %v497 = vrot.slane %v496, 4
          %vm498 = vcmp.lt.s32.totalorder %v496, %v497
          %v499 = vsel %vm498, %v496, %v497
          %v500 = vrot.slane %v499, 2
          %vm501 = vcmp.lt.s32.totalorder %v499, %v500
          %v502 = vsel %vm501, %v499, %v500
          %v503 = vrot.slane %v502, 1
          %vm504 = vcmp.lt.s32.totalorder %v502, %v503
          %v505 = vsel %vm504, %v502, %v503
          %vm506 = vcmp.eq.s32.totalorder %v421, %v505
          %v507 = vrsqrt.pop %v493
          %v508 = vmul.f32 %v493, %v507
          %vm509 = vcmp.eq.f32.partialorder %v493, inf
          %v510 = vsel %vm509, %v493, %v508
          %vm511 = vcmp.eq.f32.partialorder %v493, 0.0
          %v512 = vand.u32 %v493, 2147483648
          %v513 = vsel %vm511, %v512, %v510
          %v514 = vadd.f32 %v513, 1e-08
          %v515 = vrcp.pop %v514
          %v516 = vsel %vm506, %v515, %v484
          %v517 = vadd.f32 %v485, %v515
          %vm518 = vcmask 64512
          %v520 = vsel %vm518, %v383, 0
          %522 = vmatprep.subr.mxu0 0.0
          %523 = vmatpush1.msra.mxu0 0.0
          %524 = vmatprep.subr.mxu0 0.0
          %525 = vmatpush1.msra.mxu0 0.0
          %526 = vmatprep.subr.mxu0 0.0
          %527 = vmatpush1.msra.mxu0 0.0
          %528 = vmatprep.subr.mxu0 0.0
          %529 = vmatpush1.msra.mxu0 0.0
          %530 = vmatprep.subr.mxu0 0.0
          %531 = vmatpush1.msra.mxu0 0.0
          %532 = vmatprep.subr.mxu0 0.0
          %533 = vmatpush1.msra.mxu0 0.0
          %534 = vmatprep.subr.mxu0 0.0
          %535 = vmatpush1.msra.mxu0 0.0
          %536 = vmatprep.subr.mxu0 0.0
          %537 = vmatpush1.msra.mxu0 0.0
          %538 = vmatprep.subr.mxu0 0.0
          %539 = vmatpush1.msra.mxu0 0.0
          %540 = vmatprep.subr.mxu0 0.0
          %541 = vmatpush1.msra.mxu0 0.0
          %542 = vmatprep.subr.mxu0 0.0
          %543 = vmatpush1.msra.mxu0 0.0
          %544 = vmatprep.subr.mxu0 0.0
          %545 = vmatpush1.msra.mxu0 0.0
          %546 = vmatprep.subr.mxu0 0.0
          %547 = vmatpush1.msra.mxu0 0.0
          %548 = vmatprep.subr.mxu0 0.0
          %549 = vmatpush1.msra.mxu0 0.0
          %550 = vmatprep.subr.mxu0 0.0
          %551 = vmatpush1.msra.mxu0 0.0
          %552 = vmatprep.subr.mxu0 0.0
          %553 = vmatpush1.msra.mxu0 %v516
          %554 = vmatprep.subr.mxu0 0.0
          %555 = vmatpush2.msra.mxu0 0.0
          %556 = vmatprep.subr.mxu0 0.0
          %557 = vmatpush2.msra.mxu0 0.0
          %558 = vmatprep.subr.mxu0 0.0
          %559 = vmatpush2.msra.mxu0 0.0
          %560 = vmatprep.subr.mxu0 0.0
          %561 = vmatpush2.msra.mxu0 0.0
          %562 = vmatprep.subr.mxu0 0.0
          %563 = vmatpush2.msra.mxu0 0.0
          %564 = vmatprep.subr.mxu0 0.0
          %565 = vmatpush2.msra.mxu0 0.0
          %566 = vmatprep.subr.mxu0 0.0
          %567 = vmatpush2.msra.mxu0 0.0
          %568 = vmatprep.subr.mxu0 0.0
          %569 = vmatpush2.msra.mxu0 0.0
          %570 = vmatprep.subr.mxu0 0.0
          %571 = vmatpush2.msra.mxu0 0.0
          %572 = vmatprep.subr.mxu0 0.0
          %573 = vmatpush2.msra.mxu0 0.0
          %574 = vmatprep.subr.mxu0 0.0
          %575 = vmatpush2.msra.mxu0 0.0
          %576 = vmatprep.subr.mxu0 0.0
          %577 = vmatpush2.msra.mxu0 0.0
          %578 = vmatprep.subr.mxu0 0.0
          %579 = vmatpush2.msra.mxu0 0.0
          %580 = vmatprep.subr.mxu0 0.0
          %581 = vmatpush2.msra.mxu0 0.0
          %582 = vmatprep.subr.mxu0 0.0
          %583 = vmatpush2.msra.mxu0 0.0
          %584 = vmatprep.subr.mxu0 0.0
          %585 = vmatpush2.msra.mxu0 0.0
          %586 = vmatprep.mubr.f32.mxu0 0.0
          %587 = vmatmul.mubr.f32.gmra.mxu0 %v520
          %v588 = vpop.f32.mrf.mxu0
          %v589 = vadd.f32 0.0, %v588
          %v590 = vpop.f32.mrf.mxu0
          %591 = vdwg.mxu0
          %v592 = vrcp.pop %v517
          %v593 = vmul.f32 %v589, %v592
          %594 = vst.msk [vmem:[#allocation2] sm:$0xff] %vm422, %v593
          %s595 = scalar_lea.vmem %s370, %s384
          %v596 = vld [vmem:[%s595] sm:$0xf]
          %vm597 = vcmask 125952
          %598 = vst.msk [vmem:[#allocation2 + $0x8] sm:$0xf] %vm597, %v596
          %v599 = vld [vmem:[%s4] sm:$0xff]
          %v600 = vld [vmem:[%s4 + $0x8] sm:$0xff]
          %v601 = vld [vmem:[%s4 + $0x10] sm:$0xff]
          %v602 = vld [vmem:[%s4 + $0x18] sm:$0xff]
          %v603 = vld [vmem:[#allocation2] sm:$0xff]
          %v604 = vld [vmem:[#allocation2 + $0x8] sm:$0xf]
          %v605 = vld [vmem:[%s5] sm:$0xff]
          %v606 = vld [vmem:[%s5 + $0x8] sm:$0xff]
          %v607 = vld [vmem:[%s5 + $0x10] sm:$0xff]
          %v608 = vld [vmem:[%s5 + $0x18] sm:$0xff]
          %610 = vset.pattern.permute.xlu0 0
          %611 = vperm.xlu0 %610, %v605
          %v612 = vpop.permute.xlu0 %611
          %615 = vset.pattern.permute.xlu0 0
          %616 = vperm.xlu0 %615, %v606
          %v617 = vpop.permute.xlu0 %616
          %620 = vset.pattern.permute.xlu0 0
          %621 = vperm.xlu0 %620, %v607
          %v622 = vpop.permute.xlu0 %621
          %625 = vset.pattern.permute.xlu0 0
          %626 = vperm.xlu0 %625, %v608
          %v627 = vpop.permute.xlu0 %626
          %vm629 = vcmask 97280
          %v631 = vsel %vm629, %v599, 0
          %v634 = vsel %vm629, %v600, 0
          %v637 = vsel %vm629, %v601, 0
          %v640 = vsel %vm629, %v602, 0
          %vm642 = vcmask 1043456
          %v644 = vsel %vm642, %v604, 0
          %646 = vmatprep.subr.mxu0 0.0
          %647 = vmatpush1.msra.mxu0 0.0
          %648 = vmatprep.subr.mxu0 0.0
          %649 = vmatpush1.msra.mxu0 0.0
          %650 = vmatprep.subr.mxu0 0.0
          %651 = vmatpush1.msra.mxu0 0.0
          %652 = vmatprep.subr.mxu0 0.0
          %653 = vmatpush1.msra.mxu0 0.0
          %654 = vmatprep.subr.mxu0 0.0
          %655 = vmatpush1.msra.mxu0 0.0
          %656 = vmatprep.subr.mxu0 0.0
          %657 = vmatpush1.msra.mxu0 0.0
          %658 = vmatprep.subr.mxu0 0.0
          %659 = vmatpush1.msra.mxu0 0.0
          %660 = vmatprep.subr.mxu0 0.0
          %661 = vmatpush1.msra.mxu0 0.0
          %662 = vmatprep.subr.mxu0 0.0
          %663 = vmatpush1.msra.mxu0 0.0
          %664 = vmatprep.subr.mxu0 0.0
          %665 = vmatpush1.msra.mxu0 0.0
          %666 = vmatprep.subr.mxu0 0.0
          %667 = vmatpush1.msra.mxu0 0.0
          %668 = vmatprep.subr.mxu0 0.0
          %669 = vmatpush1.msra.mxu0 0.0
          %670 = vmatprep.subr.mxu0 0.0
          %671 = vmatpush1.msra.mxu0 0.0
          %672 = vmatprep.subr.mxu0 0.0
          %673 = vmatpush1.msra.mxu0 0.0
          %674 = vmatprep.subr.mxu0 0.0
          %675 = vmatpush1.msra.mxu0 %v644
          %676 = vmatprep.subr.mxu0 0.0
          %677 = vmatpush1.msra.mxu0 %v603
          %678 = vmatprep.subr.mxu0 0.0
          %679 = vmatpush2.msra.mxu0 0.0
          %680 = vmatprep.subr.mxu0 0.0
          %681 = vmatpush2.msra.mxu0 0.0
          %682 = vmatprep.subr.mxu0 0.0
          %683 = vmatpush2.msra.mxu0 0.0
          %684 = vmatprep.subr.mxu0 0.0
          %685 = vmatpush2.msra.mxu0 0.0
          %686 = vmatprep.subr.mxu0 0.0
          %687 = vmatpush2.msra.mxu0 0.0
          %688 = vmatprep.subr.mxu0 0.0
          %689 = vmatpush2.msra.mxu0 0.0
          %690 = vmatprep.subr.mxu0 0.0
          %691 = vmatpush2.msra.mxu0 0.0
          %692 = vmatprep.subr.mxu0 0.0
          %693 = vmatpush2.msra.mxu0 0.0
          %694 = vmatprep.subr.mxu0 0.0
          %695 = vmatpush2.msra.mxu0 0.0
          %696 = vmatprep.subr.mxu0 0.0
          %697 = vmatpush2.msra.mxu0 0.0
          %698 = vmatprep.subr.mxu0 0.0
          %699 = vmatpush2.msra.mxu0 0.0
          %700 = vmatprep.subr.mxu0 0.0
          %701 = vmatpush2.msra.mxu0 0.0
          %702 = vmatprep.subr.mxu0 0.0
          %703 = vmatpush2.msra.mxu0 0.0
          %704 = vmatprep.subr.mxu0 0.0
          %705 = vmatpush2.msra.mxu0 0.0
          %706 = vmatprep.subr.mxu0 0.0
          %707 = vmatpush2.msra.mxu0 0.0
          %708 = vmatprep.subr.mxu0 0.0
          %709 = vmatpush2.msra.mxu0 0.0
          %710 = vmatprep.mubr.f32.mxu0 0.0
          %711 = vmatmul.mubr.f32.gmra.mxu0 %v631
          %v712 = vpop.f32.mrf.mxu0
          %v713 = vadd.f32 %v612, %v712
          %v714 = vpop.f32.mrf.mxu0
          %715 = vmatprep.mubr.f32.mxu0 0.0
          %716 = vmatmul.mubr.f32.gmra.mxu0 %v634
          %v717 = vpop.f32.mrf.mxu0
          %v718 = vadd.f32 %v617, %v717
          %v719 = vpop.f32.mrf.mxu0
          %720 = vmatprep.mubr.f32.mxu0 0.0
          %721 = vmatmul.mubr.f32.gmra.mxu0 %v637
          %v722 = vpop.f32.mrf.mxu0
          %v723 = vadd.f32 %v622, %v722
          %v724 = vpop.f32.mrf.mxu0
          %725 = vmatprep.mubr.f32.mxu0 0.0
          %726 = vmatmul.mubr.f32.gmra.mxu0 %v640
          %v727 = vpop.f32.mrf.mxu0
          %v728 = vadd.f32 %v627, %v727
          %v729 = vpop.f32.mrf.mxu0
          %730 = vdwg.mxu0
          %v731 = vmax.f32 %v713, 0.0
          %v732 = vmax.f32 %v718, 0.0
          %v733 = vmax.f32 %v723, 0.0
          %v734 = vmax.f32 %v728, 0.0
          %v735 = vld [vmem:[%s6] sm:$0xff]
          %v736 = vld [vmem:[%s6 + $0x8] sm:$0xff]
          %v737 = vld [vmem:[%s7] sm:$0xff]
          %v738 = vld [vmem:[%s7 + $0x8] sm:$0xff]
          %740 = vset.pattern.permute.xlu0 0
          %741 = vperm.xlu0 %740, %v737
          %v742 = vpop.permute.xlu0 %741
          %745 = vset.pattern.permute.xlu0 0
          %746 = vperm.xlu0 %745, %v738
          %v747 = vpop.permute.xlu0 %746
          %vm749 = vcmask 261120
          %v751 = vsel %vm749, %v735, 0
          %v754 = vsel %vm749, %v736, 0
          %756 = vmatprep.subr.mxu0 0.0
          %757 = vmatpush1.msra.mxu0 0.0
          %758 = vmatprep.subr.mxu0 0.0
          %759 = vmatpush1.msra.mxu0 0.0
          %760 = vmatprep.subr.mxu0 0.0
          %761 = vmatpush1.msra.mxu0 0.0
          %762 = vmatprep.subr.mxu0 0.0
          %763 = vmatpush1.msra.mxu0 0.0
          %764 = vmatprep.subr.mxu0 0.0
          %765 = vmatpush1.msra.mxu0 0.0
          %766 = vmatprep.subr.mxu0 0.0
          %767 = vmatpush1.msra.mxu0 0.0
          %768 = vmatprep.subr.mxu0 0.0
          %769 = vmatpush1.msra.mxu0 0.0
          %770 = vmatprep.subr.mxu0 0.0
          %771 = vmatpush1.msra.mxu0 0.0
          %772 = vmatprep.subr.mxu0 0.0
          %773 = vmatpush1.msra.mxu0 0.0
          %774 = vmatprep.subr.mxu0 0.0
          %775 = vmatpush1.msra.mxu0 0.0
          %776 = vmatprep.subr.mxu0 0.0
          %777 = vmatpush1.msra.mxu0 0.0
          %778 = vmatprep.subr.mxu0 0.0
          %779 = vmatpush1.msra.mxu0 0.0
          %780 = vmatprep.subr.mxu0 0.0
          %781 = vmatpush1.msra.mxu0 %v734
          %782 = vmatprep.subr.mxu0 0.0
          %783 = vmatpush1.msra.mxu0 %v733
          %784 = vmatprep.subr.mxu0 0.0
          %785 = vmatpush1.msra.mxu0 %v732
          %786 = vmatprep.subr.mxu0 0.0
          %787 = vmatpush1.msra.mxu0 %v731
          %788 = vmatprep.subr.mxu0 0.0
          %789 = vmatpush2.msra.mxu0 0.0
          %790 = vmatprep.subr.mxu0 0.0
          %791 = vmatpush2.msra.mxu0 0.0
          %792 = vmatprep.subr.mxu0 0.0
          %793 = vmatpush2.msra.mxu0 0.0
          %794 = vmatprep.subr.mxu0 0.0
          %795 = vmatpush2.msra.mxu0 0.0
          %796 = vmatprep.subr.mxu0 0.0
          %797 = vmatpush2.msra.mxu0 0.0
          %798 = vmatprep.subr.mxu0 0.0
          %799 = vmatpush2.msra.mxu0 0.0
          %800 = vmatprep.subr.mxu0 0.0
          %801 = vmatpush2.msra.mxu0 0.0
          %802 = vmatprep.subr.mxu0 0.0
          %803 = vmatpush2.msra.mxu0 0.0
          %804 = vmatprep.subr.mxu0 0.0
          %805 = vmatpush2.msra.mxu0 0.0
          %806 = vmatprep.subr.mxu0 0.0
          %807 = vmatpush2.msra.mxu0 0.0
          %808 = vmatprep.subr.mxu0 0.0
          %809 = vmatpush2.msra.mxu0 0.0
          %810 = vmatprep.subr.mxu0 0.0
          %811 = vmatpush2.msra.mxu0 0.0
          %812 = vmatprep.subr.mxu0 0.0
          %813 = vmatpush2.msra.mxu0 0.0
          %814 = vmatprep.subr.mxu0 0.0
          %815 = vmatpush2.msra.mxu0 0.0
          %816 = vmatprep.subr.mxu0 0.0
          %817 = vmatpush2.msra.mxu0 0.0
          %818 = vmatprep.subr.mxu0 0.0
          %819 = vmatpush2.msra.mxu0 0.0
          %820 = vmatprep.mubr.f32.mxu0 0.0
          %821 = vmatmul.mubr.f32.gmra.mxu0 %v751
          %v822 = vpop.f32.mrf.mxu0
          %v823 = vadd.f32 %v742, %v822
          %v824 = vpop.f32.mrf.mxu0
          %825 = vmatprep.mubr.f32.mxu0 0.0
          %826 = vmatmul.mubr.f32.gmra.mxu0 %v754
          %v827 = vpop.f32.mrf.mxu0
          %v828 = vadd.f32 %v747, %v827
          %v829 = vpop.f32.mrf.mxu0
          %830 = vdwg.mxu0
          %v831 = vmax.f32 %v823, 0.0
          %v832 = vmax.f32 %v828, 0.0
          %s833 = smul.u32 %s374, 16
          %s834 = scalar_lea.vmem %s347, %s833 [#allocation3]
          %835 = vst.msk [vmem:[%s834] sm:$0xff] %vm422, %v831
          %836 = vst.msk [vmem:[%s834 + $0x8] sm:$0xff] %vm422, %v832
        $region57: #{p4d_trans_conv.1} parent=51 // loop_footer
          %s378 = sadd.s32 1, %s374
        $region58: #{p4d_trans_conv.1} parent=51 // loop_footer_branch
          %373 = sbr.rel target = $region54
        $region59: #{p4d_trans_conv.1} parent=51 // loop_exit
          _
        %s837 = sand.u32 %s218, 1
        %s838 = scalar_lea.sflag [#allocation4], %s837
        %s839 = sand.u32 %s218, 1
        %s840 = smul.addr %s839, 48
        %s841 = scalar_lea.vmem [#allocation3], %s840
        // Predicated region
        $region60: #{p4d_trans_conv.1} parent=51 // pred_check
          %p842 = pneg %p228
        $region61: #{p4d_trans_conv.1} parent=51 // pred_check_branch
          %844 = sbr.rel (%p842) target = $region63
        $region62: #{p4d_trans_conv.1} parent=51 // pred_region
          %s845 = smul.u32 3, %s22
          %s847 = ssub.s32 768, 768
          %848 = vsyncadd %s838, %s847
          %s849 = smul.addr %s845, 2
          %s850 = smul.addr %s849, 128
          %s851 = scalar_lea.hbm %s8, %s850
          %s852 = sshll.u32 %s841, 4
          %s853 = int_to_ptr.vmem [resolvable:$true] %s852
          %858 = dma.vmem_to_hbm [thread:$0]  %s853, 768, %s851, %s838, 128, 128, 8
        $region63: #{p4d_trans_conv.1} parent=51 // pred_fallthru
          _
      $region52: #{p4d_trans_conv.1} parent=5 // pred_fallthru
        _
      %p859 = scmp.le.s32.totalorder 2, %s17
      // Predicated region
      $region64: #{p4d_trans_conv.1} parent=5 // pred_check
        %p860 = pneg %p859
      $region65: #{p4d_trans_conv.1} parent=5 // pred_check_branch
        %862 = sbr.rel (%p860) target = $region67
      $region66: #{p4d_trans_conv.1} parent=5 // pred_region
        %s863 = ssub.s32 %s17, 2
        // Predicated region
        $region68: #{p4d_trans_conv.1} parent=66 // pred_check
          %p864 = pneg %p234
        $region69: #{p4d_trans_conv.1} parent=66 // pred_check_branch
          %866 = sbr.rel (%p864) target = $region71
        $region70: #{p4d_trans_conv.1} parent=66 // pred_region
          %s867 = sand.u32 %s219, 1
          %s868 = scalar_lea.sflag [#allocation4], %s867
          %s869 = sand.u32 %s219, 1
          %s870 = smul.addr %s869, 48
          %s871 = scalar_lea.vmem [#allocation3], %s870
          %872 = dma.done %s868, 768
        $region71: #{p4d_trans_conv.1} parent=66 // pred_fallthru
          _
      $region67: #{p4d_trans_conv.1} parent=5 // pred_fallthru
        _
    $region6: #{p4d_trans_conv.1} parent=1 // loop_footer
      %s21 = sadd.s32 1, %s17
    $region7: #{p4d_trans_conv.1} parent=1 // loop_footer_branch
      %16 = sbr.rel target = $region3
    $region8: #{p4d_trans_conv.1} parent=1 // loop_exit
      _
    %873 = vsyncpa [#allocation4], 1
    %s874 = scalar_lea.sflag [#allocation4], 1
    %875 = vsyncpa %s874, 1

</llo_original>
